<compile_context>
chip_gen: v7x
topology: tpu7x:2x2x1
jax: 0.10.0
libtpu: 0.0.40
codegen_flags: <defaults>
</compile_context>

<pallas_src>
import functools

import jax
import jax.numpy as jnp
from jax.experimental import pallas as pl
from jax.experimental.pallas import tpu as pltpu

_VMEM_LIMIT = 32 * 1024 * 1024


# ---------------------------------------------------------------------------
# helpers
# ---------------------------------------------------------------------------

def _round_up(v, m):
    return (v + m - 1) // m * m


def _pick_lane_tile(total):
    """Lane tile for the batch-folded conv matmul: multiple of 128, >=2 grid
    steps at small sizes (v7x has 2 TensorCores), capped at 2048 lanes."""
    tp = _round_up(total, 128)
    if tp <= 256:
        return 128
    if tp <= 4096:
        return 256
    return 2048


def _pick_pin_tile(pout_pad, pin):
    """Pin tile for grid_sample so the per-step (Pout_pad, pin_tile) f32 slab
    stays <= ~16 MiB (fits v7x's 64 MiB VMEM with double-buffer headroom)."""
    budget = 16 * 1024 * 1024
    t = budget // (pout_pad * 4)
    t = max(128, min(2048, (t // 128) * 128))
    return min(t, _round_up(pin, 128))


# ---------------------------------------------------------------------------
# Pallas kernels
# ---------------------------------------------------------------------------

def _conv_mm_kernel(cols_ref, w_ref, b_ref, o_ref, *, fuse):
    """(Cout, CK) @ (CK, lane_tile) + bias, optional fused sigmoid.
    Batch is folded into the lane axis; the grid tiles the N*P lanes."""
    y = jnp.dot(w_ref[...], cols_ref[...], preferred_element_type=jnp.float32)
    y = y + b_ref[...]
    if fuse == "sigmoid":
        y = 1.0 / (1.0 + jnp.exp(-y))
    o_ref[...] = y.astype(o_ref.dtype)


def _bn_lrelu_kernel(x_ref, g_ref, b_ref, o_ref, *, count):
    """BatchNorm2d (training-mode batch stats, eps=1e-5, biased variance) +
    LeakyReLU(0.01), fused, directly on the (N, C, H*W) layout."""
    x = x_ref[...]                                               # (N, C, P)
    s1 = jnp.sum(x, axis=2, keepdims=True)                       # lane reduce
    mean = jnp.sum(s1, axis=0, keepdims=True) / count            # (1, C, 1)
    d = x - mean
    s2 = jnp.sum(d * d, axis=2, keepdims=True)
    var = jnp.sum(s2, axis=0, keepdims=True) / count             # biased
    y = d * jax.lax.rsqrt(var + 1e-5)
    y = y * g_ref[...] + b_ref[...]
    o_ref[...] = jnp.where(y >= 0.0, y, 0.01 * y)


def _grid_sample_kernel(x_ref, tw_ref, ti_ref, o_ref, acc_ref):
    """One (batch n, Pin-tile t) step of bilinear grid_sample.

    The (Pout_pad, pin_tile) interpolation slab is built additively from the
    four precomputed taps (weight + flat input index; OOB weights already
    zeroed in the wrapper), cast to bf16 and contracted with the image tile
    on the MXU.  The (C, Pout_pad) result lives in VMEM scratch across the
    Pin-tile ("arbitrary") grid axis."""
    t = pl.program_id(1)

    @pl.when(t == 0)
    def _init():
        acc_ref[...] = jnp.zeros_like(acc_ref)

    xt = x_ref[0]                       # (C, pin_tile) f32
    tw = tw_ref[0]                      # (Pout_pad, 4) f32 tap weights
    ti = ti_ref[0]                      # (Pout_pad, 4) i32 flat input indices
    pout = tw.shape[0]
    pin_tile = xt.shape[1]

    col = t * pin_tile + jax.lax.broadcasted_iota(
        jnp.int32, (pout, pin_tile), 1)
    slab = jnp.zeros((pout, pin_tile), jnp.float32)
    for k in range(4):
        # additive masked form: invalid taps carry weight 0, so any index
        # aliasing from negative / out-of-range flat indices contributes 0.
        slab = slab + jnp.where(col == ti[:, k:k + 1], tw[:, k:k + 1], 0.0)

    acc_ref[...] += jax.lax.dot_general(
        xt.astype(jnp.bfloat16), slab.astype(jnp.bfloat16),
        (((1,), (1,)), ((), ())), preferred_element_type=jnp.float32)

    @pl.when(t == pl.num_programs(1) - 1)
    def _finalize():
        o_ref[0] = acc_ref[...].astype(o_ref.dtype)


# ---------------------------------------------------------------------------
# Wrappers
# ---------------------------------------------------------------------------

def conv2d(x, w, b, *, stride=1, pad=0, fuse=None):
    """Conv2d via batch-folded im2col matmul: (Cout, CK) @ (CK, N*P)."""
    N, Cin, H, W = x.shape
    Cout, _, K, _ = w.shape
    Ho = (H + 2 * pad - K) // stride + 1
    Wo = (W + 2 * pad - K) // stride + 1
    P = Ho * Wo
    L = N * P
    CK = Cin * K * K

    # TODO(synk): im2col is still materialized host-side; fusing it into the
    # kernel (in-VMEM shifted accumulates) would cut input HBM traffic ~K*K.
    xt = jnp.transpose(x, (1, 0, 2, 3))                      # (Cin, N, H, W)
    xp = jnp.pad(xt, ((0, 0), (0, 0), (pad, pad), (pad, pad)))
    patches = []
    for dy in range(K):
        for dx in range(K):
            patches.append(xp[:, :,
                               dy:dy + stride * (Ho - 1) + 1:stride,
                               dx:dx + stride * (Wo - 1) + 1:stride])
    cols = jnp.stack(patches, axis=1)                        # (Cin, KK, N, Ho, Wo)
    cols = cols.reshape(CK, L)

    tile = _pick_lane_tile(L)
    Lpad = _round_up(L, tile)
    cols = jnp.pad(cols, ((0, 0), (0, Lpad - L)))
    wf = w.reshape(Cout, CK).astype(jnp.float32)
    bf = b.reshape(Cout, 1).astype(jnp.float32)

    out = pl.pallas_call(
        functools.partial(_conv_mm_kernel, fuse=fuse),
        out_shape=jax.ShapeDtypeStruct((Cout, Lpad), jnp.float32),
        grid=(Lpad // tile,),
        in_specs=[
            pl.BlockSpec((CK, tile), lambda i: (0, i)),
            pl.BlockSpec((Cout, CK), lambda i: (0, 0)),
            pl.BlockSpec((Cout, 1), lambda i: (0, 0)),
        ],
        out_specs=pl.BlockSpec((Cout, tile), lambda i: (0, i)),
        compiler_params=pltpu.CompilerParams(
            dimension_semantics=("parallel",),
            vmem_limit_bytes=_VMEM_LIMIT),
    )(cols, wf, bf)

    out = out[:, :L].reshape(Cout, N, Ho, Wo)
    return jnp.transpose(out, (1, 0, 2, 3))                  # NCHW


def batchnorm_leakyrelu(x, gamma, beta):
    N, C, H, W = x.shape
    P = H * W
    xf = x.reshape(N, C, P)
    y = pl.pallas_call(
        functools.partial(_bn_lrelu_kernel, count=float(N * P)),
        out_shape=jax.ShapeDtypeStruct((N, C, P), jnp.float32),
        compiler_params=pltpu.CompilerParams(vmem_limit_bytes=_VMEM_LIMIT),
    )(xf, gamma.reshape(1, C, 1), beta.reshape(1, C, 1))
    return y.reshape(N, C, H, W)


def grid_sample_stn(x, grid_nchw, prior):
    """xs = F.grid_sample(x, tanh(grid + prior)), align_corners=True, zeros pad."""
    N, C, Hin, Win = x.shape
    _, _, Hg, Wg = grid_nchw.shape
    Pout, Pin = Hg * Wg, Hin * Win

    # exact replication of PyTorch `grid.view(-1, H, W, 2)` (raw reinterpret)
    g = grid_nchw.reshape(N, Hg, Wg, 2)
    # lane-dense coordinate math in XLA (tanh/floor/weights), not (Pout,1).
    tx = jnp.tanh(g[..., 0] + prior[0, :, :, 0])
    ty = jnp.tanh(g[..., 1] + prior[0, :, :, 1])
    ix = (tx + 1.0) * 0.5 * (Win - 1)
    iy = (ty + 1.0) * 0.5 * (Hin - 1)
    x0 = jnp.floor(ix)
    y0 = jnp.floor(iy)
    x1 = x0 + 1.0
    y1 = y0 + 1.0
    wx1 = ix - x0
    wx0 = 1.0 - wx1
    wy1 = iy - y0
    wy0 = 1.0 - wy1

    ws, ids = [], []
    for (yy, xx, wy, wx) in ((y0, x0, wy0, wx0), (y0, x1, wy0, wx1),
                             (y1, x0, wy1, wx0), (y1, x1, wy1, wx1)):
        valid = ((xx >= 0.0) & (xx <= Win - 1.0)
                 & (yy >= 0.0) & (yy <= Hin - 1.0))
        ws.append(jnp.where(valid, wy * wx, 0.0))
        ids.append((yy * Win + xx).astype(jnp.int32))
    tap_w = jnp.stack(ws, axis=-1).reshape(N, Pout, 4).astype(jnp.float32)
    tap_id = jnp.stack(ids, axis=-1).reshape(N, Pout, 4)

    Pout_pad = _round_up(Pout, 128)
    pin_tile = _pick_pin_tile(Pout_pad, Pin)
    Pin_pad = _round_up(Pin, pin_tile)
    n_pin = Pin_pad // pin_tile

    tap_w = jnp.pad(tap_w, ((0, 0), (0, Pout_pad - Pout), (0, 0)))
    tap_id = jnp.pad(tap_id, ((0, 0), (0, Pout_pad - Pout), (0, 0)))
    xf = jnp.pad(x.reshape(N, C, Pin), ((0, 0), (0, 0), (0, Pin_pad - Pin)))

    out = pl.pallas_call(
        _grid_sample_kernel,
        out_shape=jax.ShapeDtypeStruct((N, C, Pout_pad), jnp.float32),
        grid=(N, n_pin),
        in_specs=[
            pl.BlockSpec((1, C, pin_tile), lambda n, t: (n, 0, t)),
            pl.BlockSpec((1, Pout_pad, 4), lambda n, t: (n, 0, 0)),
            pl.BlockSpec((1, Pout_pad, 4), lambda n, t: (n, 0, 0)),
        ],
        out_specs=pl.BlockSpec((1, C, Pout_pad), lambda n, t: (n, 0, 0)),
        scratch_shapes=[pltpu.VMEM((C, Pout_pad), jnp.float32)],
        compiler_params=pltpu.CompilerParams(
            dimension_semantics=("parallel", "arbitrary"),
            vmem_limit_bytes=_VMEM_LIMIT),
    )(xf, tap_w, tap_id)

    return out[:, :, :Pout].reshape(N, C, Hg, Wg)


def fold_upsample2_into_conv(w):
    """nearest x2 Upsample followed by conv(k=3, stride=2, pad=2) is exactly a
    conv(k=2, stride=1, pad=1) on the original tensor with this folded kernel."""
    w00 = w[:, :, 0, 0] + w[:, :, 0, 1] + w[:, :, 1, 0] + w[:, :, 1, 1]
    w01 = w[:, :, 0, 2] + w[:, :, 1, 2]
    w10 = w[:, :, 2, 0] + w[:, :, 2, 1]
    w11 = w[:, :, 2, 2]
    row0 = jnp.stack([w00, w01], axis=-1)
    row1 = jnp.stack([w10, w11], axis=-1)
    return jnp.stack([row0, row1], axis=-2)              # (Cout, Cin, 2, 2)


# ---------------------------------------------------------------------------
# Model: parameters + forward
# ---------------------------------------------------------------------------

def make_grid_prior(pic_size):
    # PyTorch hardcodes 128; parametrized here by pic_size.
    lin = jnp.linspace(-1.0, 1.0, pic_size).astype(jnp.float32)
    prior = jnp.zeros((1, pic_size, pic_size, 2), jnp.float32)
    prior = prior.at[0, :, :, 0].add(lin)            # x-coord varies along W
    prior = prior.at[0, :, :, 1].add(lin[:, None])   # y-coord varies along H
    return prior


def init_params(key, input_depth, spatial_only=False):
    d = input_depth
    f = d + 3
    f1_in = d if spatial_only else f
    ks = jax.random.split(key, 6)

    def w(k, shape):
        return (0.1 * jax.random.normal(k, shape)).astype(jnp.float32)

    return dict(
        # TODO(synk): the `skip` encoder-decoders (skip_args_main / skip_args_grid)
        # are not defined in the source module; each is simplified to a single
        # 3x3 'same' convolution producing the channel counts the forward needs.
        w_grid=w(ks[0], (2, d, 3, 3)), b_grid=jnp.zeros((2,), jnp.float32),
        w_ctx=w(ks[1], (3, d, 3, 3)), b_ctx=jnp.zeros((3,), jnp.float32),
        w_f1=w(ks[2], (f, f1_in, 3, 3)), b_f1=w(ks[3], (f,)),
        bn_g=jnp.ones((f,), jnp.float32), bn_b=jnp.zeros((f,), jnp.float32),
        w_f2=w(ks[4], (3, f, 3, 3)), b_f2=w(ks[5], (3,)),
    )


def net_forward(params, x, *, spatial_only=False):
    N, Cin, S, _ = x.shape
    prior = make_grid_prior(S)

    # self.pre_grid_(x) -> 2-channel grid, then STN (tiled grid_sample kernel)
    grid = conv2d(x, params["w_grid"], params["b_grid"], stride=1, pad=1)
    xs = grid_sample_stn(x, grid, prior)                     # (N, Cin, S, S)

    if spatial_only:
        h = xs
    else:
        ctx = conv2d(x, params["w_ctx"], params["b_ctx"], stride=1, pad=1)
        h = jnp.concatenate([xs, ctx], axis=1)               # (N, Cin+3, S, S)

    # final: Upsample(x2, nearest) + conv(k3, s2, p2) folded into one 2x2 conv
    w2 = fold_upsample2_into_conv(params["w_f1"])
    h = conv2d(h, w2, params["b_f1"], stride=1, pad=1)       # (N, f, S+1, S+1)
    # fused BatchNorm2d + LeakyReLU (no layout transposes)
    h = batchnorm_leakyrelu(h, params["bn_g"], params["bn_b"])
    # conv(k=3, stride=1, pad=2) + Sigmoid (fused into the matmul kernel)
    h = conv2d(h, params["w_f2"], params["b_f2"], stride=1, pad=2,
               fuse="sigmoid")                               # (N, 3, S+3, S+3)
    return h


# ---------------------------------------------------------------------------
# Main
# ---------------------------------------------------------------------------

if __name__ == "__main__":
    key = jax.random.PRNGKey(0)
    k_x, k_p = jax.random.split(key)

    N, INPUT_DEPTH, PIC_SIZE = 2, 4, 16
    x = jax.random.normal(k_x, (N, INPUT_DEPTH, PIC_SIZE, PIC_SIZE),
                          dtype=jnp.float32)
    params = init_params(k_p, INPUT_DEPTH, spatial_only=False)

    y = net_forward(params, x, spatial_only=False)
    y = jax.block_until_ready(y)

    # upsample 2x + conv k3/s2/p2 (folded) -> 17; conv k3/s1/p2 -> 19
    assert y.shape == (N, 3, PIC_SIZE + 3, PIC_SIZE + 3), y.shape
    assert bool(jnp.all(jnp.isfinite(y)))
    print("KERNEL_OK")
</pallas_src>

<mosaic_0001>
module attributes {stable_mosaic.version = 11 : i64} {
  func.func @_conv_mm_kernel(%arg0: i32, %arg1: memref<36x256xf32, #tpu.memory_space<vmem>>, %arg2: memref<2x36xf32, #tpu.memory_space<vmem>>, %arg3: memref<2x1xf32, #tpu.memory_space<vmem>>, %arg4: memref<2x256xf32, #tpu.memory_space<vmem>>) attributes {dimension_semantics = [#tpu.dimension_semantics<parallel>], iteration_bounds = array<i64: 2>, scalar_prefetch = 0 : i64, scratch_operands = 0 : i64, tpu.core_type = #tpu.core_type<tc>, window_params = [{transform_indices = @transform_0, window_bounds = array<i64: 36, 256>}, {pipeline_mode = #tpu.pipeline_mode<synchronous>, transform_indices = @transform_1, window_bounds = array<i64: 2, 36>}, {pipeline_mode = #tpu.pipeline_mode<synchronous>, transform_indices = @transform_2, window_bounds = array<i64: 2, 1>}, {transform_indices = @transform_3, window_bounds = array<i64: 2, 256>}]} {
    %c0 = arith.constant 0 : index
    %c0_0 = arith.constant 0 : index
    %0 = vector.load %arg2[%c0, %c0_0] : memref<2x36xf32, #tpu.memory_space<vmem>>, vector<2x36xf32>
    %c0_1 = arith.constant 0 : index
    %c0_2 = arith.constant 0 : index
    %1 = vector.load %arg1[%c0_1, %c0_2] : memref<36x256xf32, #tpu.memory_space<vmem>>, vector<36x256xf32>
    %cst = arith.constant dense<0.000000e+00> : vector<2x256xf32>
    %2 = tpu.matmul %0, %1, %cst {dimension_numbers = #tpu.dot_dimension_numbers<[1], [0], [0], [1], [0, 0, 1, 1], [], []>} : vector<2x36xf32>, vector<36x256xf32>, vector<2x256xf32> -> vector<2x256xf32>
    %c0_3 = arith.constant 0 : index
    %c0_4 = arith.constant 0 : index
    %3 = vector.load %arg3[%c0_3, %c0_4] : memref<2x1xf32, #tpu.memory_space<vmem>>, vector<2x1xf32>
    %4 = vector.broadcast %3 : vector<2x1xf32> to vector<2x256xf32>
    %5 = arith.addf %2, %4 : vector<2x256xf32>
    %c0_5 = arith.constant 0 : index
    %c0_6 = arith.constant 0 : index
    %6 = vector.load %arg4[%c0_5, %c0_6] : memref<2x256xf32, #tpu.memory_space<vmem>>, vector<2x256xf32>
    tpu.vector_store %arg4[%c0_5, %c0_6], %5 {strides = array<i32>} : memref<2x256xf32, #tpu.memory_space<vmem>>, vector<2x256xf32>,
    return
  }
  func.func @transform_0(%arg0: i32) -> (i32, i32) {
    %c0_i32 = arith.constant 0 : i32
    %c0_i32_0 = arith.constant 0 : i32
    return %c0_i32, %arg0 : i32, i32
  }
  func.func @transform_1(%arg0: i32) -> (i32, i32) {
    %c0_i32 = arith.constant 0 : i32
    %c0_i32_0 = arith.constant 0 : i32
    %c0_i32_1 = arith.constant 0 : i32
    return %c0_i32, %c0_i32_0 : i32, i32
  }
  func.func @transform_2(%arg0: i32) -> (i32, i32) {
    %c0_i32 = arith.constant 0 : i32
    %c0_i32_0 = arith.constant 0 : i32
    %c0_i32_1 = arith.constant 0 : i32
    return %c0_i32, %c0_i32_0 : i32, i32
  }
  func.func @transform_3(%arg0: i32) -> (i32, i32) {
    %c0_i32 = arith.constant 0 : i32
    %c0_i32_0 = arith.constant 0 : i32
    return %c0_i32, %arg0 : i32, i32
  }
}

</mosaic_0001>

<llo_original>
// kernel: tpu_custom_call.1
$region0: #{tpu_custom_call.1}
  #allocation0 [shape = 'u32[]', space=smem, size = 0x4, offset = 0x4, fixed_abs, tag = 'smem constant byte address 0x4 - core index']
  #allocation1 [shape = 'u32[144,128]{1,0:T(1,128)}', space=vmem, size = 0x12000, scoped, tag = 'internal scratch']
  %s0 = inlined_call_operand.hbm [shape: f32[36,512], index: 0, kind: input, shape index: {}]
  %s1 = inlined_call_operand.vmem [shape: f32[2,36], index: 1, kind: input, shape index: {}]
  %s2 = inlined_call_operand.vmem [shape: f32[2,1], index: 2, kind: input, shape index: {}]
  %s3 = inlined_call_operand.hbm [shape: f32[2,512], index: 3, kind: output, shape index: {}]
  %s4 = sld [smem:[#allocation0]]
  $region49: #{tpu_custom_call.1} parent=0
    _
  %s6 = ssub.s32 1, %s4
  %s7 = scalar_select 0, %s6, %s4
  $region1: #{tpu_custom_call.1} parent=0
    #allocation2 [shape = 'u8[81920]{0}', space=vmem, size = 0x14000, scoped, tag = 'input window, operand 0']
    #allocation3 [shape = 's32[2]{0}', space=sflag, size = 0x8, scoped, tag = 'scoped memory for tpu_custom_call.1']
    #allocation4 [shape = 's32[2]{0}', space=sflag, size = 0x8, scoped, tag = 'scoped memory for tpu_custom_call.1']
    #allocation5 [shape = 'u8[4096]{0}', space=vmem, size = 0x1000, scoped, tag = 'output window, operand 0']
    %8 = vsyncpa [#allocation3], 0
    %s9 = scalar_lea.sflag [#allocation3], 1
    %10 = vsyncpa %s9, 0
    %11 = vsyncpa [#allocation4], 0
    %s12 = scalar_lea.sflag [#allocation4], 1
    %13 = vsyncpa %s12, 0
    loop: start=0, step=1, limit=4
    $region2: #{tpu_custom_call.1} parent=1 // loop_pre_header
      _
    $region3: #{tpu_custom_call.1} parent=1 // loop_header
      %s15 = sphi 0, %s19
      %p16 = scmp.ge.s32.totalorder %s15, 4
      %s25 = sphi 0, %s27
      %s28 = sphi 0, %s25
      %s29 = sphi 0, %s28
      %s45 = sphi 0, %s29
      %s49 = sphi 0, %s49
      %s51 = sphi 0, %s49
      %s52 = sphi 0, %s51
      %s66 = sphi 0, %s52
      %s70 = sphi 0, %s70
      %s72 = sphi 0, %s70
      %s73 = sphi 0, %s72
      %s87 = sphi 0, %s73
      %s93 = sphi 0, %s95
      %s96 = sphi 0, %s93
      %s97 = sphi 0, %s96
      %s113 = sphi 0, %s97
    $region4: #{tpu_custom_call.1} parent=1 // loop_header_branch
      %18 = sbr.rel (%p16) target = $region8
    $region5: #{tpu_custom_call.1} parent=1 // loop_body
      %s20 = ssub.s32 %s15, 1
      %s21 = ssub.s32 %s15, 2
      %s22 = sadd.s32 %s15, 1
      %s23 = ssub.s32 %s15, %s22
      %p24 = scmp.eq.s32.totalorder %s23, 0
      %s26 = sadd.s32 %s25, 1
      %s27 = scalar_select %p24, %s25, %s26
      %p30 = pneg %p24
      %p31 = scmp.eq.s32.totalorder %s15, 1
      %p32 = por %p30, %p31
      %p33 = scmp.ne.s32.totalorder %s25, %s28
      %p34 = scmp.eq.s32.totalorder %s15, 0
      %p35 = por %p33, %p34
      %p36 = scmp.ne.s32.totalorder %s25, %s28
      %p37 = scmp.eq.s32.totalorder %s20, 1
      %p38 = por %p36, %p37
      %p39 = scmp.ne.s32.totalorder %s28, %s29
      %p40 = scmp.eq.s32.totalorder %s20, 0
      %p41 = por %p39, %p40
      %p42 = scmp.ne.s32.totalorder %s28, %s29
      %p43 = scmp.eq.s32.totalorder %s21, 1
      %p44 = por %p42, %p43
      %p46 = scmp.ne.s32.totalorder %s29, %s45
      %p47 = scmp.eq.s32.totalorder %s21, 0
      %p48 = por %p46, %p47
      %s50 = sadd.s32 %s49, 1
      %p53 = scmp.eq.s32.totalorder %s15, 1
      %p54 = scmp.ne.s32.totalorder %s49, %s51
      %p55 = scmp.eq.s32.totalorder %s15, 0
      %p56 = por %p54, %p55
      %p57 = scmp.ne.s32.totalorder %s49, %s51
      %p58 = scmp.eq.s32.totalorder %s20, 1
      %p59 = por %p57, %p58
      %p60 = scmp.ne.s32.totalorder %s51, %s52
      %p61 = scmp.eq.s32.totalorder %s20, 0
      %p62 = por %p60, %p61
      %p63 = scmp.ne.s32.totalorder %s51, %s52
      %p64 = scmp.eq.s32.totalorder %s21, 1
      %p65 = por %p63, %p64
      %p67 = scmp.ne.s32.totalorder %s52, %s66
      %p68 = scmp.eq.s32.totalorder %s21, 0
      %p69 = por %p67, %p68
      %s71 = sadd.s32 %s70, 1
      %p74 = scmp.eq.s32.totalorder %s15, 1
      %p75 = scmp.ne.s32.totalorder %s70, %s72
      %p76 = scmp.eq.s32.totalorder %s15, 0
      %p77 = por %p75, %p76
      %p78 = scmp.ne.s32.totalorder %s70, %s72
      %p79 = scmp.eq.s32.totalorder %s20, 1
      %p80 = por %p78, %p79
      %p81 = scmp.ne.s32.totalorder %s72, %s73
      %p82 = scmp.eq.s32.totalorder %s20, 0
      %p83 = por %p81, %p82
      %p84 = scmp.ne.s32.totalorder %s72, %s73
      %p85 = scmp.eq.s32.totalorder %s21, 1
      %p86 = por %p84, %p85
      %p88 = scmp.ne.s32.totalorder %s73, %s87
      %p89 = scmp.eq.s32.totalorder %s21, 0
      %p90 = por %p88, %p89
      %s91 = ssub.s32 %s15, %s22
      %p92 = scmp.eq.s32.totalorder %s91, 0
      %s94 = sadd.s32 %s93, 1
      %s95 = scalar_select %p92, %s93, %s94
      %p98 = pneg %p92
      %p99 = scmp.eq.s32.totalorder %s15, 1
      %p100 = por %p98, %p99
      %p101 = scmp.ne.s32.totalorder %s93, %s96
      %p102 = scmp.eq.s32.totalorder %s15, 0
      %p103 = por %p101, %p102
      %p104 = scmp.ne.s32.totalorder %s93, %s96
      %p105 = scmp.eq.s32.totalorder %s20, 1
      %p106 = por %p104, %p105
      %p107 = scmp.ne.s32.totalorder %s96, %s97
      %p108 = scmp.eq.s32.totalorder %s20, 0
      %p109 = por %p107, %p108
      %p110 = scmp.ne.s32.totalorder %s96, %s97
      %p111 = scmp.eq.s32.totalorder %s21, 1
      %p112 = por %p110, %p111
      %p114 = scmp.ne.s32.totalorder %s97, %s113
      %p115 = scmp.eq.s32.totalorder %s21, 0
      %p116 = por %p114, %p115
      %p117 = scmp.le.s32.totalorder 1, %s15
      %p118 = scmp.lt.s32.totalorder %s15, 3
      %p119 = pnand %p117, %p118
      %p120 = pneg %p119
      // Predicated region
      $region9: #{tpu_custom_call.1} parent=5 // pred_check
        _
      $region10: #{tpu_custom_call.1} parent=5 // pred_check_branch
        %122 = sbr.rel (%p119) target = $region12
      $region11: #{tpu_custom_call.1} parent=5 // pred_region
        %s123 = ssub.s32 %s15, 1
        // Predicated region
        $region13: #{tpu_custom_call.1} parent=11 // pred_check
          %p124 = pneg %p62
        $region14: #{tpu_custom_call.1} parent=11 // pred_check_branch
          %126 = sbr.rel (%p124) target = $region16
        $region15: #{tpu_custom_call.1} parent=11 // pred_region
          _
        $region16: #{tpu_custom_call.1} parent=11 // pred_fallthru
          _
        // Predicated region
        $region17: #{tpu_custom_call.1} parent=11 // pred_check
          %p127 = pneg %p83
        $region18: #{tpu_custom_call.1} parent=11 // pred_check_branch
          %129 = sbr.rel (%p127) target = $region20
        $region19: #{tpu_custom_call.1} parent=11 // pred_region
          _
        $region20: #{tpu_custom_call.1} parent=11 // pred_fallthru
          _
      $region12: #{tpu_custom_call.1} parent=5 // pred_fallthru
        _
      %p130 = scmp.lt.s32.totalorder %s15, 2
      // Predicated region
      $region21: #{tpu_custom_call.1} parent=5 // pred_check
        %p131 = pneg %p130
      $region22: #{tpu_custom_call.1} parent=5 // pred_check_branch
        %133 = sbr.rel (%p131) target = $region24
      $region23: #{tpu_custom_call.1} parent=5 // pred_region
        // Predicated region
        $region25: #{tpu_custom_call.1} parent=23 // pred_check
          %p134 = pneg %p35
        $region26: #{tpu_custom_call.1} parent=23 // pred_check_branch
          %136 = sbr.rel (%p134) target = $region28
        $region27: #{tpu_custom_call.1} parent=23 // pred_region
          %s137 = sand.u32 %s25, 1
          %s138 = scalar_lea.sflag [#allocation3], %s137
          %s139 = sand.u32 %s25, 1
          %s140 = smul.addr %s139, 80
          %s141 = scalar_lea.vmem [#allocation2], %s140
          %s142 = smul.u32 2, %s15
          %s144 = ssub.s32 1280, 1280
          %145 = vsyncadd %s138, %s144
          %s146 = smul.addr %s142, 128
          %s147 = scalar_lea.hbm %s0, %s146
          %s148 = sshll.u32 %s141, 4
          %s149 = int_to_ptr.vmem [resolvable:$true] %s148
          %154 = dma.hbm_to_vmem [thread:$0]  %s147, 1280, %s149, %s138, 512, 256, 16
        $region28: #{tpu_custom_call.1} parent=23 // pred_fallthru
          _
      $region24: #{tpu_custom_call.1} parent=5 // pred_fallthru
        _
      %p155 = scmp.le.s32.totalorder 1, %s15
      %p156 = scmp.lt.s32.totalorder %s15, 3
      %p157 = pnand %p155, %p156
      %p158 = pneg %p157
      // Predicated region
      $region29: #{tpu_custom_call.1} parent=5 // pred_check
        _
      $region30: #{tpu_custom_call.1} parent=5 // pred_check_branch
        %160 = sbr.rel (%p157) target = $region32
      $region31: #{tpu_custom_call.1} parent=5 // pred_region
        %s161 = ssub.s32 %s15, 1
        %s162 = sand.u32 %s28, 1
        %s163 = scalar_lea.sflag [#allocation3], %s162
        %s164 = sand.u32 %s28, 1
        %s165 = smul.addr %s164, 80
        %s166 = scalar_lea.vmem [#allocation2], %s165
        // Predicated region
        $region33: #{tpu_custom_call.1} parent=31 // pred_check
          %p167 = pneg %p41
        $region34: #{tpu_custom_call.1} parent=31 // pred_check_branch
          %169 = sbr.rel (%p167) target = $region36
        $region35: #{tpu_custom_call.1} parent=31 // pred_region
          %170 = dma.done %s163, 1280
        $region36: #{tpu_custom_call.1} parent=31 // pred_fallthru
          _
        %s171 = sand.u32 %s28, 1
        %s172 = scalar_lea.sflag [#allocation3], %s171
        %s173 = sand.u32 %s28, 1
        %s174 = smul.addr %s173, 80
        %s175 = scalar_lea.vmem [#allocation2], %s174
        %p176 = pneg %p41
        %p177 = pneg %p38
        %p178 = pneg %p62
        %p179 = pneg %p59
        %p180 = pneg %p83
        %p181 = pneg %p80
        %p182 = pneg %p109
        %p183 = pneg %p106
        %s184 = sand.u32 %s96, 1
        %s185 = scalar_lea.sflag [#allocation4], %s184
        %s186 = sand.u32 %s96, 1
        %s187 = smul.addr %s186, 4
        %s188 = scalar_lea.vmem [#allocation5], %s187
        %s189 = smul.u32 2, %s20
        %s190 = smul.u32 2, %s20
        %v191 = vld [vmem:[%s1] sm:$0x3]
        %v192 = vld [vmem:[%s166] sm:$0xff]
        %v193 = vld [vmem:[%s166 + $0x8] sm:$0xff]
        %v194 = vld [vmem:[%s166 + $0x10] sm:$0xff]
        %v195 = vld [vmem:[%s166 + $0x18] sm:$0xff]
        %v196 = vld [vmem:[%s166 + $0x20] sm:$0xff]
        %v197 = vld [vmem:[%s166 + $0x28] sm:$0xff]
        %v198 = vld [vmem:[%s166 + $0x30] sm:$0xff]
        %v199 = vld [vmem:[%s166 + $0x38] sm:$0xff]
        %v200 = vld [vmem:[%s166 + $0x40] sm:$0xf]
        %v201 = vld [vmem:[%s166 + $0x48] sm:$0xf]
        %v202 = vld [vmem:[%s2] sm:$0x3]
        %204 = vset.pattern.permute.xlu0 0
        %205 = vperm.xlu0 %204, %v202
        %v206 = vpop.permute.xlu0 %205
        %vm208 = vcmask 293888
        %v210 = vsel %vm208, %v191, 0
        %vm212 = vcmask 1043456
        %v214 = vsel %vm212, %v200, 0
        %v217 = vsel %vm212, %v201, 0
        %219 = vmatprep.subr.mxu0 %v193
        %220 = vmatpush1.msra.mxu0 %v192
        %221 = vmatprep.subr.mxu0 %v195
        %222 = vmatpush1.msra.mxu0 %v194
        %223 = vmatprep.subr.mxu0 %v197
        %224 = vmatpush1.msra.mxu0 %v196
        %225 = vmatprep.subr.mxu0 %v199
        %226 = vmatpush1.msra.mxu0 %v198
        %227 = vmatprep.subr.mxu0 %v217
        %228 = vmatpush1.msra.mxu0 %v214
        %229 = vmatprep.subr.mxu0 0.0
        %230 = vmatpush1.msra.mxu0 0.0
        %231 = vmatprep.subr.mxu0 0.0
        %232 = vmatpush1.msra.mxu0 0.0
        %233 = vmatprep.subr.mxu0 0.0
        %234 = vmatpush1.msra.mxu0 0.0
        %235 = vmatprep.subr.mxu0 0.0
        %236 = vmatpush1.msra.mxu0 0.0
        %237 = vmatprep.subr.mxu0 0.0
        %238 = vmatpush1.msra.mxu0 0.0
        %239 = vmatprep.subr.mxu0 0.0
        %240 = vmatpush1.msra.mxu0 0.0
        %241 = vmatprep.subr.mxu0 0.0
        %242 = vmatpush1.msra.mxu0 0.0
        %243 = vmatprep.subr.mxu0 0.0
        %244 = vmatpush1.msra.mxu0 0.0
        %245 = vmatprep.subr.mxu0 0.0
        %246 = vmatpush1.msra.mxu0 0.0
        %247 = vmatprep.subr.mxu0 0.0
        %248 = vmatpush1.msra.mxu0 0.0
        %249 = vmatprep.subr.mxu0 0.0
        %250 = vmatpush1.msra.mxu0 0.0
        %251 = vmatprep.subr.mxu0 0.0
        %252 = vmatpush1.msra.mxu0 0.0
        %253 = vmatprep.subr.mxu0 0.0
        %254 = vmatpush1.msra.mxu0 0.0
        %255 = vmatprep.subr.mxu0 0.0
        %256 = vmatpush1.msra.mxu0 0.0
        %257 = vmatprep.subr.mxu0 0.0
        %258 = vmatpush1.msra.mxu0 0.0
        %259 = vmatprep.subr.mxu0 0.0
        %260 = vmatpush1.msra.mxu0 0.0
        %261 = vmatprep.subr.mxu0 0.0
        %262 = vmatpush1.msra.mxu0 0.0
        %263 = vmatprep.subr.mxu0 0.0
        %264 = vmatpush1.msra.mxu0 0.0
        %265 = vmatprep.subr.mxu0 0.0
        %266 = vmatpush1.msra.mxu0 0.0
        %267 = vmatprep.subr.mxu0 0.0
        %268 = vmatpush1.msra.mxu0 0.0
        %269 = vmatprep.subr.mxu0 0.0
        %270 = vmatpush1.msra.mxu0 0.0
        %271 = vmatprep.subr.mxu0 0.0
        %272 = vmatpush1.msra.mxu0 0.0
        %273 = vmatprep.subr.mxu0 0.0
        %274 = vmatpush1.msra.mxu0 0.0
        %275 = vmatprep.subr.mxu0 0.0
        %276 = vmatpush1.msra.mxu0 0.0
        %277 = vmatprep.subr.mxu0 0.0
        %278 = vmatpush1.msra.mxu0 0.0
        %279 = vmatprep.subr.mxu0 0.0
        %280 = vmatpush1.msra.mxu0 0.0
        %281 = vmatprep.subr.mxu0 0.0
        %282 = vmatpush1.msra.mxu0 0.0
        %283 = vmatprep.mubr.f32.mxu0 0.0
        %284 = vmatmul.mubr.f32.gmra.mrb[0].mxu0 %v210
        %v285 = vpop.f32.mrb[0].mxu0
        %v286 = vadd.f32 %v206, %v285
        %v287 = vpop.f32.mrb[0].mxu0
        %v288 = vadd.f32 %v206, %v287
        %289 = vdwg.mxu0
        %v292 = vcombine.low %v286, %v288
        %v294 = vunpack.c.l.s4 1983009808
        %v295 = vunpack.c.0.s8 %v294
        %v296 = vlaneseq
        %v297 = vshrl.u32 %v296, 7
        %v298 = vsub.s32 %v295, %v297
        %v299 = vrot.slane %v292, %v298
        %301 = vst [vmem:[%s188] sm:$0xf] %v299
        %s302 = sand.u32 %s96, 1
        %s303 = scalar_lea.sflag [#allocation4], %s302
        %s304 = sand.u32 %s96, 1
        %s305 = smul.addr %s304, 4
        %s306 = scalar_lea.vmem [#allocation5], %s305
        // Predicated region
        $region37: #{tpu_custom_call.1} parent=31 // pred_check
          %p307 = pneg %p106
        $region38: #{tpu_custom_call.1} parent=31 // pred_check_branch
          %309 = sbr.rel (%p307) target = $region40
        $region39: #{tpu_custom_call.1} parent=31 // pred_region
          %s310 = smul.u32 2, %s20
          %s312 = ssub.s32 64, 64
          %313 = vsyncadd %s303, %s312
          %s314 = smul.addr %s310, 32
          %s315 = scalar_lea.hbm %s3, %s314
          %s317 = sshll.u32 %s306, 4
          %s318 = int_to_ptr.vmem [resolvable:$true] %s317
          %320 = dma.vmem_to_hbm [thread:$0]  %s318, 64, %s315, %s303
        $region40: #{tpu_custom_call.1} parent=31 // pred_fallthru
          _
      $region32: #{tpu_custom_call.1} parent=5 // pred_fallthru
        _
      %p321 = scmp.le.s32.totalorder 2, %s15
      // Predicated region
      $region41: #{tpu_custom_call.1} parent=5 // pred_check
        %p322 = pneg %p321
      $region42: #{tpu_custom_call.1} parent=5 // pred_check_branch
        %324 = sbr.rel (%p322) target = $region44
      $region43: #{tpu_custom_call.1} parent=5 // pred_region
        %s325 = ssub.s32 %s15, 2
        // Predicated region
        $region45: #{tpu_custom_call.1} parent=43 // pred_check
          %p326 = pneg %p112
        $region46: #{tpu_custom_call.1} parent=43 // pred_check_branch
          %328 = sbr.rel (%p326) target = $region48
        $region47: #{tpu_custom_call.1} parent=43 // pred_region
          %s329 = sand.u32 %s97, 1
          %s330 = scalar_lea.sflag [#allocation4], %s329
          %s331 = sand.u32 %s97, 1
          %s332 = smul.addr %s331, 4
          %s333 = scalar_lea.vmem [#allocation5], %s332
          %334 = dma.done %s330, 64
        $region48: #{tpu_custom_call.1} parent=43 // pred_fallthru
          _
      $region44: #{tpu_custom_call.1} parent=5 // pred_fallthru
        _
    $region6: #{tpu_custom_call.1} parent=1 // loop_footer
      %s19 = sadd.s32 1, %s15
    $region7: #{tpu_custom_call.1} parent=1 // loop_footer_branch
      %14 = sbr.rel target = $region3
    $region8: #{tpu_custom_call.1} parent=1 // loop_exit
      _
    %335 = vsyncpa [#allocation3], 1
    %s336 = scalar_lea.sflag [#allocation3], 1
    %337 = vsyncpa %s336, 1
    %338 = vsyncpa [#allocation4], 1
    %s339 = scalar_lea.sflag [#allocation4], 1
    %340 = vsyncpa %s339, 1

</llo_original>
